<compile_context>
chip_gen: v7x
topology: tpu7x:2x2x1
jax: 0.10.0
libtpu: 0.0.40
codegen_flags: <defaults>
</compile_context>

<pallas_src>
import functools
import math

import jax
import jax.numpy as jnp
from jax.experimental import pallas as pl
from jax.experimental.pallas import tpu as pltpu

EPS = 1e-8
_LANES = 128
_SUB = 8


def _round_up(n, m):
    return ((n + m - 1) // m) * m


def _lcm(a, b):
    return a * b // math.gcd(a, b)


def _wasym_loss_kernel(x_ref, y_ref, w_neg_ref, sum_ref, cnt_ref, *,
                       tile_rows, rows_valid, needs_bounds):
    # Cast immediately after load; all arithmetic stays in f32 (v5e-safe).
    x = x_ref[...].astype(jnp.float32)          # [tile_rows, 128]
    y = y_ref[...].astype(jnp.float32)          # [tile_rows, 128]

    mask = y != -1.0                            # torch's ignore label (and flat-tail pad)
    if needs_bounds:
        # Only traced when the last tile is a boundary block: mask out garbage rows
        # beyond the real array extent.
        row = (jax.lax.broadcasted_iota(jnp.int32, x.shape, 0)
               + pl.program_id(0) * tile_rows)
        mask = mask & (row < rows_valid)

    los_pos = y * jnp.log(jnp.maximum(x, EPS))
    los_neg = (1.0 - y) * jnp.log(jnp.maximum(1.0 - x, EPS))
    # neg_weight = 1 - (1 - x) == x ; final negation folded into the pre-negated weight slab.
    contrib = jnp.where(mask, (los_pos + x * los_neg) * w_neg_ref[...], 0.0)
    ones = jnp.where(mask, 1.0, 0.0)

    # VALU-only partial reduction: (tile_rows, 128) -> (8, 128) vreg-add tree.
    sum_ref[...] = jnp.sum(contrib.reshape(-1, _SUB, _LANES), axis=0)
    cnt_ref[...] = jnp.sum(ones.reshape(-1, _SUB, _LANES), axis=0)


def weighted_asymmetric_loss(x, y, weight=None, tile_rows_max=1312):
    """Pallas implementation of WeightedAsymmetricLoss.forward (default 'mean' path).

    x: (B, C) probabilities (f32 or bf16).  y: (B, C) labels in {-1, 0, 1} (int8
    preferred; any int/float dtype accepted and used as-is).  weight: (C,) or None.
    """
    B, C = x.shape
    n = B * C

    # ---- lane-dense 1-D view (free reshape) --------------------------------------
    x_flat = x.reshape(-1)
    y_flat = y.reshape(-1)

    # Pad only the flat tail to a multiple of 8*128 so the (rows, 128) view exists and
    # rows % 8 == 0 (needed for the aligned (8,128) partials).  Pad labels with -1.
    n_pad = _round_up(max(n, 1), _SUB * _LANES)
    if n_pad != n:
        x_flat = jnp.pad(x_flat, (0, n_pad - n))
        y_flat = jnp.pad(y_flat, (0, n_pad - n), constant_values=-1)

    rows = n_pad // _LANES
    x2d = x_flat.reshape(rows, _LANES)
    y2d = y_flat.reshape(rows, _LANES)

    # ---- tile size: phase-aligned with the per-class weight pattern ---------------
    period_rows = C // math.gcd(C, _LANES)      # weight pattern repeats every this many rows
    base = _lcm(period_rows, 32)                # 32: int8 sublane tile (also covers 8 for f32)
    if rows <= tile_rows_max:
        tile_rows = rows                        # single tile: any phase, full-dim block
    else:
        tile_rows = max(base, (tile_rows_max // base) * base)
        if tile_rows >= rows:
            tile_rows = rows
    num_tiles = pl.cdiv(rows, tile_rows)
    needs_bounds = (rows % tile_rows) != 0

    # ---- periodic, pre-negated per-class weight slab (resident in VMEM) -----------
    if weight is None:
        w_neg_slab = jnp.full((tile_rows, _LANES), -1.0, dtype=jnp.float32)
    else:
        w_neg = -jnp.asarray(weight, dtype=jnp.float32).reshape(-1)   # (C,)
        cls = jnp.arange(tile_rows * _LANES, dtype=jnp.int32) % C
        w_neg_slab = w_neg[cls].reshape(tile_rows, _LANES)

    kernel = functools.partial(
        _wasym_loss_kernel,
        tile_rows=tile_rows,
        rows_valid=rows,
        needs_bounds=needs_bounds,
    )

    sums, cnts = pl.pallas_call(
        kernel,
        out_shape=(
            jax.ShapeDtypeStruct((num_tiles * _SUB, _LANES), jnp.float32),
            jax.ShapeDtypeStruct((num_tiles * _SUB, _LANES), jnp.float32),
        ),
        grid=(num_tiles,),
        in_specs=[
            pl.BlockSpec((tile_rows, _LANES), lambda i: (i, 0)),   # x tile (native dtype)
            pl.BlockSpec((tile_rows, _LANES), lambda i: (i, 0)),   # y tile (int8 preferred)
            pl.BlockSpec((tile_rows, _LANES), lambda i: (0, 0)),   # -weight slab, resident
        ],
        out_specs=(
            pl.BlockSpec((_SUB, _LANES), lambda i: (i, 0)),        # per-tile sum partial
            pl.BlockSpec((_SUB, _LANES), lambda i: (i, 0)),        # per-tile count partial
        ),
        compiler_params=pltpu.CompilerParams(
            dimension_semantics=("parallel",),   # v7x: tiles split across both TensorCores
            vmem_limit_bytes=32 * 1024 * 1024,
        ),
    )(x2d, y2d, w_neg_slab)

    # Tiny cross-partial reduce + exact divide (matches the reference's mean over mask).
    return jnp.sum(sums) / jnp.sum(cnts)


def _reference(x, y, weight=None):
    xf = x.astype(jnp.float32)
    yf = y.astype(jnp.float32)
    mask = yf != -1.0
    los_pos = yf * jnp.log(jnp.maximum(xf, EPS))
    los_neg = (1.0 - yf) * jnp.log(jnp.maximum(1.0 - xf, EPS))
    loss = los_pos + xf * los_neg
    if weight is not None:
        loss = loss * jnp.asarray(weight, jnp.float32).reshape(1, -1)
    return jnp.sum(jnp.where(mask, -loss, 0.0)) / jnp.sum(mask.astype(jnp.float32))


if __name__ == "__main__":
    key = jax.random.PRNGKey(0)
    k1, k2, k3 = jax.random.split(key, 3)

    B, C = 8, 41  # OpenGraphAU: 41 AU classes; small batch
    # predictions: probabilities in (0, 1)
    x = jax.random.uniform(k1, (B, C), dtype=jnp.float32, minval=0.01, maxval=0.99)
    # labels: {-1 (ignored), 0, 1} — produced as int8 end-to-end (no wrapper cast)
    y = jax.random.randint(k2, (B, C), minval=-1, maxval=2).astype(jnp.int8)
    # deterministic per-class weight (exercise the weighted path)
    weight = 0.5 + jax.random.uniform(k3, (C,), dtype=jnp.float32)

    out = weighted_asymmetric_loss(x, y, weight)
    out = jax.block_until_ready(out)
    ref = _reference(x, y, weight)
    assert jnp.allclose(out, ref, rtol=1e-4, atol=1e-5), (out, ref)

    # Also exercise the multi-tile / ragged-last-tile / parallel-partials path
    # (rows > 1312 -> 2 tiles, last one a masked boundary block).
    kb1, kb2 = jax.random.split(jax.random.PRNGKey(1), 2)
    Bb = 4123
    xb = jax.random.uniform(kb1, (Bb, C), dtype=jnp.float32, minval=0.01, maxval=0.99)
    yb = jax.random.randint(kb2, (Bb, C), minval=-1, maxval=2).astype(jnp.int8)
    out_b = jax.block_until_ready(weighted_asymmetric_loss(xb, yb, weight))
    ref_b = _reference(xb, yb, weight)
    assert jnp.allclose(out_b, ref_b, rtol=1e-4, atol=1e-5), (out_b, ref_b)

    print("KERNEL_OK")
</pallas_src>

<mosaic_0001>
module attributes {stable_mosaic.version = 11 : i64} {
  func.func @_wasym_loss_kernel(%arg0: i32, %arg1: memref<8x128xf32, #tpu.memory_space<vmem>>, %arg2: memref<8x128xi8, #tpu.memory_space<vmem>>, %arg3: memref<8x128xf32, #tpu.memory_space<vmem>>, %arg4: memref<8x128xf32, #tpu.memory_space<vmem>>, %arg5: memref<8x128xf32, #tpu.memory_space<vmem>>) attributes {dimension_semantics = [#tpu.dimension_semantics<parallel>], iteration_bounds = array<i64: 1>, scalar_prefetch = 0 : i64, scratch_operands = 0 : i64, tpu.core_type = #tpu.core_type<tc>, window_params = [{transform_indices = @transform_0, window_bounds = array<i64: 8, 128>}, {transform_indices = @transform_1, window_bounds = array<i64: 8, 128>}, {pipeline_mode = #tpu.pipeline_mode<synchronous>, transform_indices = @transform_2, window_bounds = array<i64: 8, 128>}, {transform_indices = @transform_3, window_bounds = array<i64: 8, 128>}, {transform_indices = @transform_4, window_bounds = array<i64: 8, 128>}]} {
    %c0 = arith.constant 0 : index
    %c0_0 = arith.constant 0 : index
    %0 = vector.load %arg1[%c0, %c0_0] : memref<8x128xf32, #tpu.memory_space<vmem>>, vector<8x128xf32>
    %c0_1 = arith.constant 0 : index
    %c0_2 = arith.constant 0 : index
    %1 = vector.load %arg2[%c0_1, %c0_2] : memref<8x128xi8, #tpu.memory_space<vmem>>, vector<8x128xi8>
    %2 = arith.sitofp %1 : vector<8x128xi8> to vector<8x128xf32>
    %cst = arith.constant -1.000000e+00 : f32
    %3 = vector.broadcast %cst : f32 to vector<8x128xf32>
    %4 = arith.cmpf one, %2, %3 : vector<8x128xf32>
    %cst_3 = arith.constant 9.99999993E-9 : f32
    %5 = vector.broadcast %cst_3 : f32 to vector<8x128xf32>
    %6 = arith.maximumf %0, %5 : vector<8x128xf32>
    %7 = math.log %6 : vector<8x128xf32>
    %8 = arith.mulf %2, %7 : vector<8x128xf32>
    %cst_4 = arith.constant 1.000000e+00 : f32
    %9 = vector.broadcast %cst_4 : f32 to vector<8x128xf32>
    %10 = arith.subf %9, %2 : vector<8x128xf32>
    %cst_5 = arith.constant 1.000000e+00 : f32
    %11 = vector.broadcast %cst_5 : f32 to vector<8x128xf32>
    %12 = arith.subf %11, %0 : vector<8x128xf32>
    %cst_6 = arith.constant 9.99999993E-9 : f32
    %13 = vector.broadcast %cst_6 : f32 to vector<8x128xf32>
    %14 = arith.maximumf %12, %13 : vector<8x128xf32>
    %15 = math.log %14 : vector<8x128xf32>
    %16 = arith.mulf %10, %15 : vector<8x128xf32>
    %17 = arith.mulf %0, %16 : vector<8x128xf32>
    %18 = arith.addf %8, %17 : vector<8x128xf32>
    %c0_7 = arith.constant 0 : index
    %c0_8 = arith.constant 0 : index
    %19 = vector.load %arg3[%c0_7, %c0_8] : memref<8x128xf32, #tpu.memory_space<vmem>>, vector<8x128xf32>
    %20 = arith.mulf %18, %19 : vector<8x128xf32>
    %cst_9 = arith.constant 0.000000e+00 : f32
    %21 = vector.broadcast %cst_9 : f32 to vector<8x128xf32>
    %22 = arith.select %4, %20, %21 : vector<8x128xi1>, vector<8x128xf32>
    %cst_10 = arith.constant 1.000000e+00 : f32
    %cst_11 = arith.constant 0.000000e+00 : f32
    %23 = vector.broadcast %cst_10 : f32 to vector<8x128xf32>
    %24 = vector.broadcast %cst_11 : f32 to vector<8x128xf32>
    %25 = arith.select %4, %23, %24 : vector<8x128xi1>, vector<8x128xf32>
    %26 = vector.shape_cast %22 : vector<8x128xf32> to vector<1x8x128xf32>
    %cst_12 = arith.constant dense<0.000000e+00> : vector<8x128xf32>
    %27 = vector.multi_reduction <add>, %26, %cst_12 [0] : vector<1x8x128xf32> to vector<8x128xf32>
    %c0_13 = arith.constant 0 : index
    %c0_14 = arith.constant 0 : index
    %28 = vector.load %arg4[%c0_13, %c0_14] : memref<8x128xf32, #tpu.memory_space<vmem>>, vector<8x128xf32>
    tpu.vector_store %arg4[%c0_13, %c0_14], %27 {strides = array<i32>} : memref<8x128xf32, #tpu.memory_space<vmem>>, vector<8x128xf32>,
    %29 = vector.shape_cast %25 : vector<8x128xf32> to vector<1x8x128xf32>
    %cst_15 = arith.constant dense<0.000000e+00> : vector<8x128xf32>
    %30 = vector.multi_reduction <add>, %29, %cst_15 [0] : vector<1x8x128xf32> to vector<8x128xf32>
    %c0_16 = arith.constant 0 : index
    %c0_17 = arith.constant 0 : index
    %31 = vector.load %arg5[%c0_16, %c0_17] : memref<8x128xf32, #tpu.memory_space<vmem>>, vector<8x128xf32>
    tpu.vector_store %arg5[%c0_16, %c0_17], %30 {strides = array<i32>} : memref<8x128xf32, #tpu.memory_space<vmem>>, vector<8x128xf32>,
    return
  }
  func.func @transform_0(%arg0: i32) -> (i32, i32) {
    %c0_i32 = arith.constant 0 : i32
    %c0_i32_0 = arith.constant 0 : i32
    return %arg0, %c0_i32 : i32, i32
  }
  func.func @transform_1(%arg0: i32) -> (i32, i32) {
    %c0_i32 = arith.constant 0 : i32
    %c0_i32_0 = arith.constant 0 : i32
    return %arg0, %c0_i32 : i32, i32
  }
  func.func @transform_2(%arg0: i32) -> (i32, i32) {
    %c0_i32 = arith.constant 0 : i32
    %c0_i32_0 = arith.constant 0 : i32
    %c0_i32_1 = arith.constant 0 : i32
    return %c0_i32, %c0_i32_0 : i32, i32
  }
  func.func @transform_3(%arg0: i32) -> (i32, i32) {
    %c0_i32 = arith.constant 0 : i32
    %c0_i32_0 = arith.constant 0 : i32
    return %arg0, %c0_i32 : i32, i32
  }
  func.func @transform_4(%arg0: i32) -> (i32, i32) {
    %c0_i32 = arith.constant 0 : i32
    %c0_i32_0 = arith.constant 0 : i32
    return %arg0, %c0_i32 : i32, i32
  }
}

</mosaic_0001>

<llo_original>
// kernel: tpu_custom_call.1
$region0: #{tpu_custom_call.1}
  #allocation0 [shape = 'u32[]', space=smem, size = 0x4, offset = 0x4, fixed_abs, tag = 'smem constant byte address 0x4 - core index']
  #allocation1 [shape = 'u32[144,128]{1,0:T(1,128)}', space=vmem, size = 0x12000, scoped, tag = 'internal scratch']
  %s0 = inlined_call_operand.hbm [shape: f32[8,128], index: 0, kind: input, shape index: {}]
  %s1 = inlined_call_operand.vmem [shape: s8[8,128], index: 1, kind: input, shape index: {}]
  %s2 = inlined_call_operand.hbm [shape: f32[8,128], index: 2, kind: input, shape index: {}]
  %s3 = inlined_call_operand.hbm [shape: f32[8,128], index: 3, kind: output, shape index: {0}]
  %s4 = inlined_call_operand.hbm [shape: f32[8,128], index: 4, kind: output, shape index: {1}]
  %5 = xla_tuple %s3, %s4
  %s6 = sld [smem:[#allocation0]]
  $region38: #{tpu_custom_call.1} parent=0
    _
  %s8 = ssub.s32 1, %s6
  %s9 = scalar_select 0, %s8, %s6
  $region1: #{tpu_custom_call.1} parent=0
    #allocation2 [shape = 'u8[4096]{0}', space=vmem, size = 0x1000, scoped, tag = 'input window, operand 0, single buffered']
    #allocation3 [shape = 's32[1]{0}', space=sflag, size = 0x4, scoped, tag = 'scoped memory for tpu_custom_call.1']
    #allocation4 [shape = 's32[1]{0}', space=sflag, size = 0x4, scoped, tag = 'scoped memory for tpu_custom_call.1']
    #allocation5 [shape = 'u8[4096]{0}', space=vmem, size = 0x1000, scoped, tag = 'input window, operand 2, single buffered']
    #allocation6 [shape = 's32[1]{0}', space=sflag, size = 0x4, scoped, tag = 'scoped memory for tpu_custom_call.1']
    #allocation7 [shape = 'u8[4096]{0}', space=vmem, size = 0x1000, scoped, tag = 'output window, operand 0, single buffered']
    #allocation8 [shape = 'u8[4096]{0}', space=vmem, size = 0x1000, scoped, tag = 'output window, operand 1, single buffered']
    #allocation9 [shape = 's32[1]{0}', space=sflag, size = 0x4, scoped, tag = 'scoped memory for tpu_custom_call.1']
    %10 = vsyncpa [#allocation3], 0
    %11 = vsyncpa [#allocation6], 0
    %12 = vsyncpa [#allocation4], 0
    %13 = vsyncpa [#allocation9], 0
    // Predicated region
    $region2: #{tpu_custom_call.1} parent=1 // pred_check
      _
    $region3: #{tpu_custom_call.1} parent=1 // pred_check_branch
      %15 = sbr.rel (0) target = $region5
    $region4: #{tpu_custom_call.1} parent=1 // pred_region
      %s17 = ssub.s32 128, 128
      %18 = vsyncadd [#allocation3], %s17
      %s20 = sshll.u32 [#allocation2], 4
      %s21 = int_to_ptr.vmem [resolvable:$true] %s20
      %23 = dma.hbm_to_vmem [thread:$0]  %s0, 128, %s21, [#allocation3]
    $region5: #{tpu_custom_call.1} parent=1 // pred_fallthru
      _
    // Predicated region
    $region6: #{tpu_custom_call.1} parent=1 // pred_check
      _
    $region7: #{tpu_custom_call.1} parent=1 // pred_check_branch
      %25 = sbr.rel (0) target = $region9
    $region8: #{tpu_custom_call.1} parent=1 // pred_region
      _
    $region9: #{tpu_custom_call.1} parent=1 // pred_fallthru
      _
    // Predicated region
    $region10: #{tpu_custom_call.1} parent=1 // pred_check
      _
    $region11: #{tpu_custom_call.1} parent=1 // pred_check_branch
      %27 = sbr.rel (0) target = $region13
    $region12: #{tpu_custom_call.1} parent=1 // pred_region
      %s29 = ssub.s32 128, 128
      %30 = vsyncadd [#allocation6], %s29
      %s32 = sshll.u32 [#allocation5], 4
      %s33 = int_to_ptr.vmem [resolvable:$true] %s32
      %35 = dma.hbm_to_vmem [thread:$0]  %s2, 128, %s33, [#allocation6]
    $region13: #{tpu_custom_call.1} parent=1 // pred_fallthru
      _
    // Predicated region
    $region14: #{tpu_custom_call.1} parent=1 // pred_check
      _
    $region15: #{tpu_custom_call.1} parent=1 // pred_check_branch
      %37 = sbr.rel (0) target = $region17
    $region16: #{tpu_custom_call.1} parent=1 // pred_region
      %38 = dma.done [#allocation3], 128
    $region17: #{tpu_custom_call.1} parent=1 // pred_fallthru
      _
    // Predicated region
    $region18: #{tpu_custom_call.1} parent=1 // pred_check
      _
    $region19: #{tpu_custom_call.1} parent=1 // pred_check_branch
      %40 = sbr.rel (0) target = $region21
    $region20: #{tpu_custom_call.1} parent=1 // pred_region
      %41 = dma.done [#allocation6], 128
    $region21: #{tpu_custom_call.1} parent=1 // pred_fallthru
      _
    %v42 = vld [vmem:[#allocation2] sm:$0xff]
    %v43 = vld [vmem:[%s1] sm:$0x3]
    %v44 = vunpack.c.0.s8 %v43
    %v45 = vcvt.s32.f32 %v44
    %vm46 = vcmp.ne.f32.partialorder %v45, -1.0
    %v47 = vmax.f32 %v42, 1e-08
    %v48 = vlog2.pop %v47
    %v49 = vmul.f32 %v48, 0.6931472
    %v50 = vmul.f32 %v45, %v49
    %v51 = vsub.f32 1.0, %v45
    %v52 = vsub.f32 1.0, %v42
    %v53 = vmax.f32 %v52, 1e-08
    %v54 = vlog2.pop %v53
    %v55 = vmul.f32 %v54, 0.6931472
    %v56 = vmul.f32 %v51, %v55
    %v57 = vmul.f32 %v42, %v56
    %v58 = vadd.f32 %v50, %v57
    %v59 = vld [vmem:[#allocation5] sm:$0xff]
    %v60 = vmul.f32 %v58, %v59
    %v61 = vsel %vm46, %v60, 0.0
    %v62 = vsel %vm46, 1.0, 0.0
    %v63 = vadd.f32 %v61, 0.0
    %64 = vst [vmem:[#allocation7] sm:$0xff] %v63
    %v65 = vadd.f32 %v62, 0.0
    %66 = vst [vmem:[#allocation8] sm:$0xff] %v65
    // Predicated region
    $region22: #{tpu_custom_call.1} parent=1 // pred_check
      _
    $region23: #{tpu_custom_call.1} parent=1 // pred_check_branch
      %68 = sbr.rel (0) target = $region25
    $region24: #{tpu_custom_call.1} parent=1 // pred_region
      %s70 = ssub.s32 128, 128
      %71 = vsyncadd [#allocation4], %s70
      %s73 = sshll.u32 [#allocation7], 4
      %s74 = int_to_ptr.vmem [resolvable:$true] %s73
      %76 = dma.vmem_to_hbm [thread:$0]  %s74, 128, %s3, [#allocation4]
    $region25: #{tpu_custom_call.1} parent=1 // pred_fallthru
      _
    // Predicated region
    $region26: #{tpu_custom_call.1} parent=1 // pred_check
      _
    $region27: #{tpu_custom_call.1} parent=1 // pred_check_branch
      %78 = sbr.rel (0) target = $region29
    $region28: #{tpu_custom_call.1} parent=1 // pred_region
      %s80 = ssub.s32 128, 128
      %81 = vsyncadd [#allocation9], %s80
      %s83 = sshll.u32 [#allocation8], 4
      %s84 = int_to_ptr.vmem [resolvable:$true] %s83
      %86 = dma.vmem_to_hbm [thread:$0]  %s84, 128, %s4, [#allocation9]
    $region29: #{tpu_custom_call.1} parent=1 // pred_fallthru
      _
    // Predicated region
    $region30: #{tpu_custom_call.1} parent=1 // pred_check
      _
    $region31: #{tpu_custom_call.1} parent=1 // pred_check_branch
      %88 = sbr.rel (0) target = $region33
    $region32: #{tpu_custom_call.1} parent=1 // pred_region
      %89 = dma.done [#allocation4], 128
    $region33: #{tpu_custom_call.1} parent=1 // pred_fallthru
      _
    // Predicated region
    $region34: #{tpu_custom_call.1} parent=1 // pred_check
      _
    $region35: #{tpu_custom_call.1} parent=1 // pred_check_branch
      %91 = sbr.rel (0) target = $region37
    $region36: #{tpu_custom_call.1} parent=1 // pred_region
      %92 = dma.done [#allocation9], 128
    $region37: #{tpu_custom_call.1} parent=1 // pred_fallthru
      _
    %93 = vsyncpa [#allocation3], 1
    %94 = vsyncpa [#allocation6], 1
    %95 = vsyncpa [#allocation4], 1
    %96 = vsyncpa [#allocation9], 1

</llo_original>
